<compile_context>
chip_gen: v7x
topology: tpu7x:2x2x1
jax: 0.10.0
libtpu: 0.0.40
codegen_flags: <defaults>
</compile_context>

<pallas_src>
import functools

import jax
import jax.numpy as jnp
from jax.experimental import pallas as pl
from jax.experimental.pallas import tpu as pltpu

LAYERS = [3] + 4 * [40] + [1]


def _mlp_kernel(x_ref, w0_ref, b0_ref, wh_ref, bh_ref, wL_ref, bL_ref, o_ref,
                *, matmul_dtype):
    """Whole-MLP forward for one tile of batch columns.

    x_ref : (3, tm)  f32          — batch on lanes
    w0_ref: (40, 3)  f32          b0_ref: (40, 1) f32
    wh_ref: (3, 40, 40) bf16/f32  bh_ref: (3, 40, 1) f32   (stacked hidden)
    wL_ref: (40, 1) f32           bL_ref: (1, 1) f32       (wL stored as column)
    o_ref : (1, tm)  f32
    """
    x = x_ref[...]            # (3, tm)
    w0 = w0_ref[...]          # (40, 3)

    # --- layer 0 on the VPU: K=3 is far too shallow for an MXU pass.
    h = (w0[:, 0:1] * x[0:1, :]
         + w0[:, 1:2] * x[1:2, :]
         + w0[:, 2:3] * x[2:3, :]
         + b0_ref[...])                                   # (40, tm) f32
    h = jnp.tanh(h)

    # --- hidden layers 1..3 on the MXU (statically unrolled).
    #     bf16 inputs, f32 accumulation; bias add + tanh stay f32.
    for l in range(wh_ref.shape[0]):
        z = jnp.dot(wh_ref[l], h.astype(matmul_dtype),
                    preferred_element_type=jnp.float32) + bh_ref[l]
        h = jnp.tanh(z)

    # --- final layer (M=1) on VPU + XLU: multiply then sublane reduction.
    out = jnp.sum(wL_ref[...] * h, axis=0, keepdims=True) + bL_ref[...]
    o_ref[...] = out.astype(o_ref.dtype)


@functools.partial(jax.jit, static_argnames=("tm", "use_bf16"))
def dnn_forward(x, params, *, tm=2048, use_bf16=True):
    """Run the MLP on x: (N, 3) -> (N, 1).

    `tm` is the batch tile (lanes per grid step), clamped to a multiple of 128
    and capped so the grid has >= 2 steps whenever the (padded) batch allows
    it (keeps both TensorCores busy on v7x).  Sweep tm in {1024, 2048, 4096}
    for large collocation batches; VMEM per step stays well under limits.
    `use_bf16=False` keeps every matmul in f32 for precision-sensitive runs.
    """
    n, d_in = x.shape
    assert d_in == LAYERS[0]
    d_out = LAYERS[-1]
    matmul_dtype = jnp.bfloat16 if use_bf16 else jnp.float32

    # --- tile-size / padding bookkeeping (lane dim must be a multiple of 128)
    tm = max(128, (tm // 128) * 128)
    n_pad = ((n + 127) // 128) * 128
    if n_pad >= 256:
        # Guarantee at least 2 grid steps so the "parallel" axis can shard
        # across both TensorCores on v7x.
        tm = min(tm, max(128, (n_pad // 2) // 128 * 128))
    else:
        tm = min(tm, n_pad)
    n_pad = ((n_pad + tm - 1) // tm) * tm

    # --- layout plumbing: batch on lanes, zero-padded via a single pad op.
    xt = jnp.pad(x.T.astype(jnp.float32), ((0, 0), (0, n_pad - n)))

    # --- weight operands: torch orientation (out, in); biases as (out, 1);
    #     the three 40x40 hidden layers stacked along a leading axis.
    (w0, b0) = params[0]
    mids = params[1:-1]
    (wL, bL) = params[-1]
    wh = jnp.stack([w for (w, _) in mids]).astype(matmul_dtype)   # (3, 40, 40)
    bh = jnp.stack([b[:, None] for (_, b) in mids])               # (3, 40, 1) f32
    b0c = b0[:, None]                                             # (40, 1) f32
    wLc = wL.T                                                    # (40, 1) f32
    bLc = bL[:, None]                                             # (1, 1)  f32

    def const_spec(shape):
        # Full-array (untiled) constant: block shape == array shape.
        return pl.BlockSpec(shape, lambda i: (0,) * len(shape))

    in_specs = [
        pl.BlockSpec((d_in, tm), lambda i: (0, i)),      # x tile (3, tm)
        const_spec(w0.shape), const_spec(b0c.shape),
        const_spec(wh.shape), const_spec(bh.shape),
        const_spec(wLc.shape), const_spec(bLc.shape),
    ]
    out_spec = pl.BlockSpec((d_out, tm), lambda i: (0, i))  # (1, tm)

    weight_bytes = sum(int(a.size) * a.dtype.itemsize
                       for a in (w0, b0c, wh, bh, wLc, bLc))
    cost = pl.CostEstimate(
        flops=9920 * n_pad,              # 2*(3*40) + 3*2*(40*40) + 2*40 per col
        transcendentals=160 * n_pad,     # 4 tanh layers x 40 features per col
        bytes_accessed=16 * n_pad + weight_bytes,
    )

    out_t = pl.pallas_call(
        functools.partial(_mlp_kernel, matmul_dtype=matmul_dtype),
        out_shape=jax.ShapeDtypeStruct((d_out, n_pad), jnp.float32),
        grid_spec=pltpu.PrefetchScalarGridSpec(
            num_scalar_prefetch=0,
            grid=(n_pad // tm,),
            in_specs=in_specs,
            out_specs=out_spec,
        ),
        compiler_params=pltpu.CompilerParams(
            dimension_semantics=("parallel",)),
        cost_estimate=cost,
    )(xt, w0, b0c, wh, bh, wLc, bLc)

    # Drop padded columns, return in the module's (N, 1) convention.
    return out_t[:, :n].T


def init_params(key):
    """Deterministic init mimicking torch.nn.Linear defaults (uniform bound
    1/sqrt(fan_in)); weights stored torch-style as (out_features, in_features),
    biases as (out_features,)."""
    params = []
    for i in range(len(LAYERS) - 1):
        fan_in, fan_out = LAYERS[i], LAYERS[i + 1]
        key, kw, kb = jax.random.split(key, 3)
        bound = 1.0 / jnp.sqrt(fan_in)
        w = jax.random.uniform(kw, (fan_out, fan_in), jnp.float32, -bound, bound)
        b = jax.random.uniform(kb, (fan_out,), jnp.float32, -bound, bound)
        params.append((w, b))
    return params


def dnn_reference(x, params):
    """Pure-JAX reference (torch semantics: x @ W.T + b, tanh between)."""
    h = x
    for i, (w, b) in enumerate(params):
        h = h @ w.T + b
        if i < len(params) - 1:
            h = jnp.tanh(h)
    return h


if __name__ == "__main__":
    key = jax.random.PRNGKey(0)
    key, kx = jax.random.split(key)

    # Small batch of collocation points (N, 3), e.g. (x, y, t) for the heat eq.
    N = 32
    x = jax.random.normal(kx, (N, LAYERS[0]), dtype=jnp.float32)
    params = init_params(key)
    ref = dnn_reference(x, params)

    # f32 path: bit-for-bit semantics of the torch module (tight tolerance).
    out_f32 = jax.block_until_ready(dnn_forward(x, params, use_bf16=False))
    assert out_f32.shape == (N, 1)
    assert jnp.allclose(out_f32, ref, atol=1e-5, rtol=1e-5), "f32 mismatch"

    # bf16-matmul path (default): f32 accumulation, looser tolerance.
    out_bf16 = jax.block_until_ready(dnn_forward(x, params))
    assert out_bf16.shape == (N, 1)
    assert jnp.allclose(out_bf16, ref, atol=5e-2, rtol=5e-2), "bf16 mismatch"

    # Exercise the padding path and a multi-step grid (n_pad=384 -> tm=128, 3 steps).
    key, kx2 = jax.random.split(key)
    N2 = 300
    x2 = jax.random.normal(kx2, (N2, LAYERS[0]), dtype=jnp.float32)
    ref2 = dnn_reference(x2, params)
    out2_f32 = jax.block_until_ready(dnn_forward(x2, params, use_bf16=False))
    assert out2_f32.shape == (N2, 1)
    assert jnp.allclose(out2_f32, ref2, atol=1e-5, rtol=1e-5), "f32 mismatch (padded)"
    out2 = jax.block_until_ready(dnn_forward(x2, params, tm=2048))
    assert out2.shape == (N2, 1)
    assert jnp.allclose(out2, ref2, atol=5e-2, rtol=5e-2), "bf16 mismatch (padded)"

    print("KERNEL_OK")
</pallas_src>

<mosaic_0001>
module attributes {stable_mosaic.version = 11 : i64} {
  func.func @_mlp_kernel(%arg0: i32, %arg1: memref<3x128xf32, #tpu.memory_space<vmem>>, %arg2: memref<40x3xf32, #tpu.memory_space<vmem>>, %arg3: memref<40x1xf32, #tpu.memory_space<vmem>>, %arg4: memref<3x40x40xf32, #tpu.memory_space<vmem>>, %arg5: memref<3x40x1xf32, #tpu.memory_space<vmem>>, %arg6: memref<40x1xf32, #tpu.memory_space<vmem>>, %arg7: memref<1x1xf32, #tpu.memory_space<vmem>>, %arg8: memref<1x128xf32, #tpu.memory_space<vmem>>) attributes {dimension_semantics = [#tpu.dimension_semantics<parallel>], iteration_bounds = array<i64: 1>, scalar_prefetch = 0 : i64, scratch_operands = 0 : i64, tpu.core_type = #tpu.core_type<tc>, window_params = [{transform_indices = @transform_0, window_bounds = array<i64: 3, 128>}, {pipeline_mode = #tpu.pipeline_mode<synchronous>, transform_indices = @transform_1, window_bounds = array<i64: 40, 3>}, {pipeline_mode = #tpu.pipeline_mode<synchronous>, transform_indices = @transform_2, window_bounds = array<i64: 40, 1>}, {pipeline_mode = #tpu.pipeline_mode<synchronous>, transform_indices = @transform_3, window_bounds = array<i64: 3, 40, 40>}, {pipeline_mode = #tpu.pipeline_mode<synchronous>, transform_indices = @transform_4, window_bounds = array<i64: 3, 40, 1>}, {pipeline_mode = #tpu.pipeline_mode<synchronous>, transform_indices = @transform_5, window_bounds = array<i64: 40, 1>}, {pipeline_mode = #tpu.pipeline_mode<synchronous>, transform_indices = @transform_6, window_bounds = array<i64: 1, 1>}, {transform_indices = @transform_7, window_bounds = array<i64: 1, 128>}]} {
    %c0 = arith.constant 0 : index
    %c0_0 = arith.constant 0 : index
    %0 = vector.load %arg1[%c0, %c0_0] : memref<3x128xf32, #tpu.memory_space<vmem>>, vector<3x128xf32>
    %c0_1 = arith.constant 0 : index
    %c0_2 = arith.constant 0 : index
    %1 = vector.load %arg2[%c0_1, %c0_2] : memref<40x3xf32, #tpu.memory_space<vmem>>, vector<40x3xf32>
    %2 = vector.extract_strided_slice %1 {offsets = [0, 0], sizes = [40, 1], strides = [1, 1]} : vector<40x3xf32> to vector<40x1xf32>
    %3 = vector.extract_strided_slice %0 {offsets = [0, 0], sizes = [1, 128], strides = [1, 1]} : vector<3x128xf32> to vector<1x128xf32>
    %4 = vector.broadcast %2 : vector<40x1xf32> to vector<40x128xf32>
    %5 = vector.broadcast %3 : vector<1x128xf32> to vector<40x128xf32>
    %6 = arith.mulf %4, %5 : vector<40x128xf32>
    %7 = vector.extract_strided_slice %1 {offsets = [0, 1], sizes = [40, 1], strides = [1, 1]} : vector<40x3xf32> to vector<40x1xf32>
    %8 = vector.extract_strided_slice %0 {offsets = [1, 0], sizes = [1, 128], strides = [1, 1]} : vector<3x128xf32> to vector<1x128xf32>
    %9 = vector.broadcast %7 : vector<40x1xf32> to vector<40x128xf32>
    %10 = vector.broadcast %8 : vector<1x128xf32> to vector<40x128xf32>
    %11 = arith.mulf %9, %10 : vector<40x128xf32>
    %12 = arith.addf %6, %11 : vector<40x128xf32>
    %13 = vector.extract_strided_slice %1 {offsets = [0, 2], sizes = [40, 1], strides = [1, 1]} : vector<40x3xf32> to vector<40x1xf32>
    %14 = vector.extract_strided_slice %0 {offsets = [2, 0], sizes = [1, 128], strides = [1, 1]} : vector<3x128xf32> to vector<1x128xf32>
    %15 = vector.broadcast %13 : vector<40x1xf32> to vector<40x128xf32>
    %16 = vector.broadcast %14 : vector<1x128xf32> to vector<40x128xf32>
    %17 = arith.mulf %15, %16 : vector<40x128xf32>
    %18 = arith.addf %12, %17 : vector<40x128xf32>
    %c0_3 = arith.constant 0 : index
    %c0_4 = arith.constant 0 : index
    %19 = vector.load %arg3[%c0_3, %c0_4] : memref<40x1xf32, #tpu.memory_space<vmem>>, vector<40x1xf32>
    %20 = vector.broadcast %19 : vector<40x1xf32> to vector<40x128xf32>
    %21 = arith.addf %18, %20 : vector<40x128xf32>
    %22 = math.tanh %21 : vector<40x128xf32>
    %c0_5 = arith.constant 0 : index
    %c0_6 = arith.constant 0 : index
    %c0_7 = arith.constant 0 : index
    %23 = vector.load %arg4[%c0_5, %c0_6, %c0_7] : memref<3x40x40xf32, #tpu.memory_space<vmem>>, vector<1x40x40xf32>
    %24 = vector.shape_cast %23 : vector<1x40x40xf32> to vector<40x40xf32>
    %cst = arith.constant dense<0.000000e+00> : vector<40x128xf32>
    %25 = tpu.matmul %24, %22, %cst {dimension_numbers = #tpu.dot_dimension_numbers<[1], [0], [0], [1], [0, 0, 1, 1], [], []>} : vector<40x40xf32>, vector<40x128xf32>, vector<40x128xf32> -> vector<40x128xf32>
    %c0_8 = arith.constant 0 : index
    %c0_9 = arith.constant 0 : index
    %c0_10 = arith.constant 0 : index
    %26 = vector.load %arg5[%c0_8, %c0_9, %c0_10] : memref<3x40x1xf32, #tpu.memory_space<vmem>>, vector<1x40x1xf32>
    %27 = vector.shape_cast %26 : vector<1x40x1xf32> to vector<40x1xf32>
    %28 = vector.broadcast %27 : vector<40x1xf32> to vector<40x128xf32>
    %29 = arith.addf %25, %28 : vector<40x128xf32>
    %30 = math.tanh %29 : vector<40x128xf32>
    %c1 = arith.constant 1 : index
    %c0_11 = arith.constant 0 : index
    %c0_12 = arith.constant 0 : index
    %31 = vector.load %arg4[%c1, %c0_11, %c0_12] : memref<3x40x40xf32, #tpu.memory_space<vmem>>, vector<1x40x40xf32>
    %32 = vector.shape_cast %31 : vector<1x40x40xf32> to vector<40x40xf32>
    %cst_13 = arith.constant dense<0.000000e+00> : vector<40x128xf32>
    %33 = tpu.matmul %32, %30, %cst_13 {dimension_numbers = #tpu.dot_dimension_numbers<[1], [0], [0], [1], [0, 0, 1, 1], [], []>} : vector<40x40xf32>, vector<40x128xf32>, vector<40x128xf32> -> vector<40x128xf32>
    %c1_14 = arith.constant 1 : index
    %c0_15 = arith.constant 0 : index
    %c0_16 = arith.constant 0 : index
    %34 = vector.load %arg5[%c1_14, %c0_15, %c0_16] : memref<3x40x1xf32, #tpu.memory_space<vmem>>, vector<1x40x1xf32>
    %35 = vector.shape_cast %34 : vector<1x40x1xf32> to vector<40x1xf32>
    %36 = vector.broadcast %35 : vector<40x1xf32> to vector<40x128xf32>
    %37 = arith.addf %33, %36 : vector<40x128xf32>
    %38 = math.tanh %37 : vector<40x128xf32>
    %c2 = arith.constant 2 : index
    %c0_17 = arith.constant 0 : index
    %c0_18 = arith.constant 0 : index
    %39 = vector.load %arg4[%c2, %c0_17, %c0_18] : memref<3x40x40xf32, #tpu.memory_space<vmem>>, vector<1x40x40xf32>
    %40 = vector.shape_cast %39 : vector<1x40x40xf32> to vector<40x40xf32>
    %cst_19 = arith.constant dense<0.000000e+00> : vector<40x128xf32>
    %41 = tpu.matmul %40, %38, %cst_19 {dimension_numbers = #tpu.dot_dimension_numbers<[1], [0], [0], [1], [0, 0, 1, 1], [], []>} : vector<40x40xf32>, vector<40x128xf32>, vector<40x128xf32> -> vector<40x128xf32>
    %c2_20 = arith.constant 2 : index
    %c0_21 = arith.constant 0 : index
    %c0_22 = arith.constant 0 : index
    %42 = vector.load %arg5[%c2_20, %c0_21, %c0_22] : memref<3x40x1xf32, #tpu.memory_space<vmem>>, vector<1x40x1xf32>
    %43 = vector.shape_cast %42 : vector<1x40x1xf32> to vector<40x1xf32>
    %44 = vector.broadcast %43 : vector<40x1xf32> to vector<40x128xf32>
    %45 = arith.addf %41, %44 : vector<40x128xf32>
    %46 = math.tanh %45 : vector<40x128xf32>
    %c0_23 = arith.constant 0 : index
    %c0_24 = arith.constant 0 : index
    %47 = vector.load %arg6[%c0_23, %c0_24] : memref<40x1xf32, #tpu.memory_space<vmem>>, vector<40x1xf32>
    %48 = vector.broadcast %47 : vector<40x1xf32> to vector<40x128xf32>
    %49 = arith.mulf %48, %46 : vector<40x128xf32>
    %cst_25 = arith.constant dense<0.000000e+00> : vector<128xf32>
    %50 = vector.multi_reduction <add>, %49, %cst_25 [0] : vector<40x128xf32> to vector<128xf32>
    %51 = vector.shape_cast %50 : vector<128xf32> to vector<1x128xf32>
    %c0_26 = arith.constant 0 : index
    %c0_27 = arith.constant 0 : index
    %52 = vector.load %arg7[%c0_26, %c0_27] : memref<1x1xf32, #tpu.memory_space<vmem>>, vector<1x1xf32>
    %53 = vector.broadcast %52 : vector<1x1xf32> to vector<1x128xf32>
    %54 = arith.addf %51, %53 : vector<1x128xf32>
    %c0_28 = arith.constant 0 : index
    %c0_29 = arith.constant 0 : index
    %55 = vector.load %arg8[%c0_28, %c0_29] : memref<1x128xf32, #tpu.memory_space<vmem>>, vector<1x128xf32>
    tpu.vector_store %arg8[%c0_28, %c0_29], %54 {strides = array<i32>} : memref<1x128xf32, #tpu.memory_space<vmem>>, vector<1x128xf32>,
    return
  }
  func.func @transform_0(%arg0: i32) -> (i32, i32) {
    %c0_i32 = arith.constant 0 : i32
    %c0_i32_0 = arith.constant 0 : i32
    return %c0_i32, %arg0 : i32, i32
  }
  func.func @transform_1(%arg0: i32) -> (i32, i32) {
    %c0_i32 = arith.constant 0 : i32
    %c0_i32_0 = arith.constant 0 : i32
    %c0_i32_1 = arith.constant 0 : i32
    return %c0_i32, %c0_i32_0 : i32, i32
  }
  func.func @transform_2(%arg0: i32) -> (i32, i32) {
    %c0_i32 = arith.constant 0 : i32
    %c0_i32_0 = arith.constant 0 : i32
    %c0_i32_1 = arith.constant 0 : i32
    return %c0_i32, %c0_i32_0 : i32, i32
  }
  func.func @transform_3(%arg0: i32) -> (i32, i32, i32) {
    %c0_i32 = arith.constant 0 : i32
    %c0_i32_0 = arith.constant 0 : i32
    %c0_i32_1 = arith.constant 0 : i32
    %c0_i32_2 = arith.constant 0 : i32
    return %c0_i32, %c0_i32_0, %c0_i32_1 : i32, i32, i32
  }
  func.func @transform_4(%arg0: i32) -> (i32, i32, i32) {
    %c0_i32 = arith.constant 0 : i32
    %c0_i32_0 = arith.constant 0 : i32
    %c0_i32_1 = arith.constant 0 : i32
    %c0_i32_2 = arith.constant 0 : i32
    return %c0_i32, %c0_i32_0, %c0_i32_1 : i32, i32, i32
  }
  func.func @transform_5(%arg0: i32) -> (i32, i32) {
    %c0_i32 = arith.constant 0 : i32
    %c0_i32_0 = arith.constant 0 : i32
    %c0_i32_1 = arith.constant 0 : i32
    return %c0_i32, %c0_i32_0 : i32, i32
  }
  func.func @transform_6(%arg0: i32) -> (i32, i32) {
    %c0_i32 = arith.constant 0 : i32
    %c0_i32_0 = arith.constant 0 : i32
    %c0_i32_1 = arith.constant 0 : i32
    return %c0_i32, %c0_i32_0 : i32, i32
  }
  func.func @transform_7(%arg0: i32) -> (i32, i32) {
    %c0_i32 = arith.constant 0 : i32
    %c0_i32_0 = arith.constant 0 : i32
    return %c0_i32, %arg0 : i32, i32
  }
}

</mosaic_0001>

<llo_original>
// kernel: dnn_forward.1
$region0: #{dnn_forward.1}
  #allocation0 [shape = 'u32[]', space=smem, size = 0x4, offset = 0x4, fixed_abs, tag = 'smem constant byte address 0x4 - core index']
  #allocation1 [shape = 'u32[144,128]{1,0:T(1,128)}', space=vmem, size = 0x12000, scoped, tag = 'internal scratch']
  #allocation2 [shape = 'f32[1,1]{1,0:T(1,128)S(1)}', space=vmem, size = 0x200, scoped, tag = 'scoped memory for dnn_forward.1']
  %s0 = inlined_call_operand.vmem [shape: f32[3,128], index: 0, kind: input, shape index: {}]
  %s1 = inlined_call_operand.vmem [shape: f32[40,3], index: 1, kind: input, shape index: {}]
  %s2 = inlined_call_operand.vmem [shape: f32[40,1], index: 2, kind: input, shape index: {}]
  %s3 = inlined_call_operand.vmem [shape: f32[3,40,40], index: 3, kind: input, shape index: {}]
  %s4 = inlined_call_operand.vmem [shape: f32[3,40,1], index: 4, kind: input, shape index: {}]
  %s5 = inlined_call_operand.vmem [shape: f32[40,1], index: 5, kind: input, shape index: {}]
  %s6 = inlined_call_operand.<no memory space> [shape: f32[1,1], index: 6, kind: input, shape index: {}]
  %s7 = inlined_call_operand.vmem [shape: f32[1,128], index: 7, kind: output, shape index: {}]
  %s8 = sld [smem:[#allocation0]]
  $region38: #{dnn_forward.1} parent=0
    _
  %s10 = ssub.s32 1, %s8
  %s11 = scalar_select 0, %s10, %s8
  %v12 = vstv %s6
  %13 = vst [vmem:[#allocation2] sm:$0x1] %v12
  // Predicated region
  $region2: #{dnn_forward.1} parent=0 // pred_check
    _
  $region3: #{dnn_forward.1} parent=0 // pred_check_branch
    %15 = sbr.rel (0) target = $region5
  $region4: #{dnn_forward.1} parent=0 // pred_region
    _
  $region5: #{dnn_forward.1} parent=0 // pred_fallthru
    _
  // Predicated region
  $region6: #{dnn_forward.1} parent=0 // pred_check
    _
  $region7: #{dnn_forward.1} parent=0 // pred_check_branch
    %17 = sbr.rel (0) target = $region9
  $region8: #{dnn_forward.1} parent=0 // pred_region
    _
  $region9: #{dnn_forward.1} parent=0 // pred_fallthru
    _
  // Predicated region
  $region10: #{dnn_forward.1} parent=0 // pred_check
    _
  $region11: #{dnn_forward.1} parent=0 // pred_check_branch
    %19 = sbr.rel (0) target = $region13
  $region12: #{dnn_forward.1} parent=0 // pred_region
    _
  $region13: #{dnn_forward.1} parent=0 // pred_fallthru
    _
  // Predicated region
  $region14: #{dnn_forward.1} parent=0 // pred_check
    _
  $region15: #{dnn_forward.1} parent=0 // pred_check_branch
    %21 = sbr.rel (0) target = $region17
  $region16: #{dnn_forward.1} parent=0 // pred_region
    _
  $region17: #{dnn_forward.1} parent=0 // pred_fallthru
    _
  // Predicated region
  $region18: #{dnn_forward.1} parent=0 // pred_check
    _
  $region19: #{dnn_forward.1} parent=0 // pred_check_branch
    %23 = sbr.rel (0) target = $region21
  $region20: #{dnn_forward.1} parent=0 // pred_region
    _
  $region21: #{dnn_forward.1} parent=0 // pred_fallthru
    _
  // Predicated region
  $region22: #{dnn_forward.1} parent=0 // pred_check
    _
  $region23: #{dnn_forward.1} parent=0 // pred_check_branch
    %25 = sbr.rel (0) target = $region25
  $region24: #{dnn_forward.1} parent=0 // pred_region
    _
  $region25: #{dnn_forward.1} parent=0 // pred_fallthru
    _
  // Predicated region
  $region26: #{dnn_forward.1} parent=0 // pred_check
    _
  $region27: #{dnn_forward.1} parent=0 // pred_check_branch
    %27 = sbr.rel (0) target = $region29
  $region28: #{dnn_forward.1} parent=0 // pred_region
    _
  $region29: #{dnn_forward.1} parent=0 // pred_fallthru
    _
  %v28 = vld [vmem:[%s0] sm:$0x7]
  %v29 = vld [vmem:[%s1] sm:$0xff]
  %v30 = vld [vmem:[%s1 + $0x8] sm:$0xff]
  %v31 = vld [vmem:[%s1 + $0x10] sm:$0xff]
  %v32 = vld [vmem:[%s1 + $0x18] sm:$0xff]
  %v33 = vld [vmem:[%s1 + $0x20] sm:$0xff]
  %35 = vset.pattern.permute.xlu0 0
  %36 = vperm.xlu0 %35, %v29
  %v37 = vpop.permute.xlu0 %36
  %40 = vset.pattern.permute.xlu0 0
  %41 = vperm.xlu0 %40, %v30
  %v42 = vpop.permute.xlu0 %41
  %45 = vset.pattern.permute.xlu0 0
  %46 = vperm.xlu0 %45, %v31
  %v47 = vpop.permute.xlu0 %46
  %50 = vset.pattern.permute.xlu0 0
  %51 = vperm.xlu0 %50, %v32
  %v52 = vpop.permute.xlu0 %51
  %55 = vset.pattern.permute.xlu0 0
  %56 = vperm.xlu0 %55, %v33
  %v57 = vpop.permute.xlu0 %56
  %v59 = vlaneseq
  %v60 = vshrl.u32 %v59, 7
  %v61 = vsub.s32 0, %v60
  %v62 = vrot.slane %v28, %v61
  %v63 = vmul.f32 %v37, %v62
  %v64 = vmul.f32 %v42, %v62
  %v65 = vmul.f32 %v47, %v62
  %v66 = vmul.f32 %v52, %v62
  %v67 = vmul.f32 %v57, %v62
  %68 = vset.pattern.permute.xlu0 1
  %69 = vperm.xlu0 %68, %v29
  %v70 = vpop.permute.xlu0 %69
  %72 = vset.pattern.permute.xlu0 1
  %73 = vperm.xlu0 %72, %v30
  %v74 = vpop.permute.xlu0 %73
  %76 = vset.pattern.permute.xlu0 1
  %77 = vperm.xlu0 %76, %v31
  %v78 = vpop.permute.xlu0 %77
  %80 = vset.pattern.permute.xlu0 1
  %81 = vperm.xlu0 %80, %v32
  %v82 = vpop.permute.xlu0 %81
  %84 = vset.pattern.permute.xlu0 1
  %85 = vperm.xlu0 %84, %v33
  %v86 = vpop.permute.xlu0 %85
  %v88 = vlaneseq
  %v89 = vshrl.u32 %v88, 7
  %v90 = vsub.s32 1, %v89
  %v91 = vrot.slane %v28, %v90
  %v92 = vmul.f32 %v70, %v91
  %v93 = vmul.f32 %v74, %v91
  %v94 = vmul.f32 %v78, %v91
  %v95 = vmul.f32 %v82, %v91
  %v96 = vmul.f32 %v86, %v91
  %v97 = vadd.f32 %v63, %v92
  %v98 = vadd.f32 %v64, %v93
  %v99 = vadd.f32 %v65, %v94
  %v100 = vadd.f32 %v66, %v95
  %v101 = vadd.f32 %v67, %v96
  %102 = vset.pattern.permute.xlu0 2
  %103 = vperm.xlu0 %102, %v29
  %v104 = vpop.permute.xlu0 %103
  %106 = vset.pattern.permute.xlu0 2
  %107 = vperm.xlu0 %106, %v30
  %v108 = vpop.permute.xlu0 %107
  %110 = vset.pattern.permute.xlu0 2
  %111 = vperm.xlu0 %110, %v31
  %v112 = vpop.permute.xlu0 %111
  %114 = vset.pattern.permute.xlu0 2
  %115 = vperm.xlu0 %114, %v32
  %v116 = vpop.permute.xlu0 %115
  %118 = vset.pattern.permute.xlu0 2
  %119 = vperm.xlu0 %118, %v33
  %v120 = vpop.permute.xlu0 %119
  %v122 = vlaneseq
  %v123 = vshrl.u32 %v122, 7
  %v124 = vsub.s32 2, %v123
  %v125 = vrot.slane %v28, %v124
  %v126 = vmul.f32 %v104, %v125
  %v127 = vmul.f32 %v108, %v125
  %v128 = vmul.f32 %v112, %v125
  %v129 = vmul.f32 %v116, %v125
  %v130 = vmul.f32 %v120, %v125
  %v131 = vadd.f32 %v97, %v126
  %v132 = vadd.f32 %v98, %v127
  %v133 = vadd.f32 %v99, %v128
  %v134 = vadd.f32 %v100, %v129
  %v135 = vadd.f32 %v101, %v130
  %v136 = vld [vmem:[%s2] sm:$0xff]
  %v137 = vld [vmem:[%s2 + $0x8] sm:$0xff]
  %v138 = vld [vmem:[%s2 + $0x10] sm:$0xff]
  %v139 = vld [vmem:[%s2 + $0x18] sm:$0xff]
  %v140 = vld [vmem:[%s2 + $0x20] sm:$0xff]
  %142 = vset.pattern.permute.xlu0 0
  %143 = vperm.xlu0 %142, %v136
  %v144 = vpop.permute.xlu0 %143
  %147 = vset.pattern.permute.xlu0 0
  %148 = vperm.xlu0 %147, %v137
  %v149 = vpop.permute.xlu0 %148
  %152 = vset.pattern.permute.xlu0 0
  %153 = vperm.xlu0 %152, %v138
  %v154 = vpop.permute.xlu0 %153
  %157 = vset.pattern.permute.xlu0 0
  %158 = vperm.xlu0 %157, %v139
  %v159 = vpop.permute.xlu0 %158
  %162 = vset.pattern.permute.xlu0 0
  %163 = vperm.xlu0 %162, %v140
  %v164 = vpop.permute.xlu0 %163
  %v166 = vadd.f32 %v131, %v144
  %v167 = vadd.f32 %v132, %v149
  %v168 = vadd.f32 %v133, %v154
  %v169 = vadd.f32 %v134, %v159
  %v170 = vadd.f32 %v135, %v164
  %v171 = vtanh.pop %v166
  %v172 = vtanh.pop %v167
  %v173 = vtanh.pop %v168
  %v174 = vtanh.pop %v169
  %v175 = vtanh.pop %v170
  %v176 = vld [vmem:[%s3] sm:$0xff]
  %v177 = vld [vmem:[%s3 + $0x8] sm:$0xff]
  %v178 = vld [vmem:[%s3 + $0x10] sm:$0xff]
  %v179 = vld [vmem:[%s3 + $0x18] sm:$0xff]
  %v180 = vld [vmem:[%s3 + $0x20] sm:$0xff]
  %v181 = vld [vmem:[%s4] sm:$0xff]
  %v182 = vld [vmem:[%s4 + $0x8] sm:$0xff]
  %v183 = vld [vmem:[%s4 + $0x10] sm:$0xff]
  %v184 = vld [vmem:[%s4 + $0x18] sm:$0xff]
  %v185 = vld [vmem:[%s4 + $0x20] sm:$0xff]
  %187 = vset.pattern.permute.xlu0 0
  %188 = vperm.xlu0 %187, %v181
  %v189 = vpop.permute.xlu0 %188
  %192 = vset.pattern.permute.xlu0 0
  %193 = vperm.xlu0 %192, %v182
  %v194 = vpop.permute.xlu0 %193
  %197 = vset.pattern.permute.xlu0 0
  %198 = vperm.xlu0 %197, %v183
  %v199 = vpop.permute.xlu0 %198
  %202 = vset.pattern.permute.xlu0 0
  %203 = vperm.xlu0 %202, %v184
  %v204 = vpop.permute.xlu0 %203
  %207 = vset.pattern.permute.xlu0 0
  %208 = vperm.xlu0 %207, %v185
  %v209 = vpop.permute.xlu0 %208
  %vm211 = vcmask 326656
  %v213 = vsel %vm211, %v176, 0
  %v216 = vsel %vm211, %v177, 0
  %v219 = vsel %vm211, %v178, 0
  %v222 = vsel %vm211, %v179, 0
  %v225 = vsel %vm211, %v180, 0
  %227 = vmatprep.subr.mxu0 0.0
  %228 = vmatpush1.msra.mxu0 %v171
  %229 = vmatprep.subr.mxu0 0.0
  %230 = vmatpush1.msra.mxu0 %v172
  %231 = vmatprep.subr.mxu0 0.0
  %232 = vmatpush1.msra.mxu0 %v173
  %233 = vmatprep.subr.mxu0 0.0
  %234 = vmatpush1.msra.mxu0 %v174
  %235 = vmatprep.subr.mxu0 0.0
  %236 = vmatpush1.msra.mxu0 %v175
  %237 = vmatprep.subr.mxu0 0.0
  %238 = vmatpush1.msra.mxu0 0.0
  %239 = vmatprep.subr.mxu0 0.0
  %240 = vmatpush1.msra.mxu0 0.0
  %241 = vmatprep.subr.mxu0 0.0
  %242 = vmatpush1.msra.mxu0 0.0
  %243 = vmatprep.subr.mxu0 0.0
  %244 = vmatpush1.msra.mxu0 0.0
  %245 = vmatprep.subr.mxu0 0.0
  %246 = vmatpush1.msra.mxu0 0.0
  %247 = vmatprep.subr.mxu0 0.0
  %248 = vmatpush1.msra.mxu0 0.0
  %249 = vmatprep.subr.mxu0 0.0
  %250 = vmatpush1.msra.mxu0 0.0
  %251 = vmatprep.subr.mxu0 0.0
  %252 = vmatpush1.msra.mxu0 0.0
  %253 = vmatprep.subr.mxu0 0.0
  %254 = vmatpush1.msra.mxu0 0.0
  %255 = vmatprep.subr.mxu0 0.0
  %256 = vmatpush1.msra.mxu0 0.0
  %257 = vmatprep.subr.mxu0 0.0
  %258 = vmatpush1.msra.mxu0 0.0
  %259 = vmatprep.subr.mxu0 0.0
  %260 = vmatpush1.msra.mxu0 0.0
  %261 = vmatprep.subr.mxu0 0.0
  %262 = vmatpush1.msra.mxu0 0.0
  %263 = vmatprep.subr.mxu0 0.0
  %264 = vmatpush1.msra.mxu0 0.0
  %265 = vmatprep.subr.mxu0 0.0
  %266 = vmatpush1.msra.mxu0 0.0
  %267 = vmatprep.subr.mxu0 0.0
  %268 = vmatpush1.msra.mxu0 0.0
  %269 = vmatprep.subr.mxu0 0.0
  %270 = vmatpush1.msra.mxu0 0.0
  %271 = vmatprep.subr.mxu0 0.0
  %272 = vmatpush1.msra.mxu0 0.0
  %273 = vmatprep.subr.mxu0 0.0
  %274 = vmatpush1.msra.mxu0 0.0
  %275 = vmatprep.subr.mxu0 0.0
  %276 = vmatpush1.msra.mxu0 0.0
  %277 = vmatprep.subr.mxu0 0.0
  %278 = vmatpush1.msra.mxu0 0.0
  %279 = vmatprep.subr.mxu0 0.0
  %280 = vmatpush1.msra.mxu0 0.0
  %281 = vmatprep.subr.mxu0 0.0
  %282 = vmatpush1.msra.mxu0 0.0
  %283 = vmatprep.subr.mxu0 0.0
  %284 = vmatpush1.msra.mxu0 0.0
  %285 = vmatprep.subr.mxu0 0.0
  %286 = vmatpush1.msra.mxu0 0.0
  %287 = vmatprep.subr.mxu0 0.0
  %288 = vmatpush1.msra.mxu0 0.0
  %289 = vmatprep.subr.mxu0 0.0
  %290 = vmatpush1.msra.mxu0 0.0
  %291 = vmatprep.mubr.f32.mxu0 0.0
  %292 = vmatmul.mubr.f32.gmra.mrb[0].mxu0 %v213
  %v293 = vpop.f32.mrb[0].mxu0
  %v294 = vadd.f32 %v189, %v293
  %v295 = vpop.f32.mrb[0].mxu0
  %296 = vmatprep.mubr.f32.mxu0 0.0
  %297 = vmatmul.mubr.f32.gmra.mrb[0].mxu0 %v216
  %v298 = vpop.f32.mrb[0].mxu0
  %v299 = vadd.f32 %v194, %v298
  %v300 = vpop.f32.mrb[0].mxu0
  %301 = vmatprep.mubr.f32.mxu0 0.0
  %302 = vmatmul.mubr.f32.gmra.mrb[0].mxu0 %v219
  %v303 = vpop.f32.mrb[0].mxu0
  %v304 = vadd.f32 %v199, %v303
  %v305 = vpop.f32.mrb[0].mxu0
  %306 = vmatprep.mubr.f32.mxu0 0.0
  %307 = vmatmul.mubr.f32.gmra.mrb[0].mxu0 %v222
  %v308 = vpop.f32.mrb[0].mxu0
  %v309 = vadd.f32 %v204, %v308
  %v310 = vpop.f32.mrb[0].mxu0
  %311 = vmatprep.mubr.f32.mxu0 0.0
  %312 = vmatmul.mubr.f32.gmra.mrb[0].mxu0 %v225
  %v313 = vpop.f32.mrb[0].mxu0
  %v314 = vadd.f32 %v209, %v313
  %v315 = vpop.f32.mrb[0].mxu0
  %316 = vdwg.mxu0
  %v317 = vtanh.pop %v294
  %v318 = vtanh.pop %v299
  %v319 = vtanh.pop %v304
  %v320 = vtanh.pop %v309
  %v321 = vtanh.pop %v314
  %s322 = scalar_lea.vmem %s3, 40
  %v323 = vld [vmem:[%s322] sm:$0xff]
  %v324 = vld [vmem:[%s322 + $0x8] sm:$0xff]
  %v325 = vld [vmem:[%s322 + $0x10] sm:$0xff]
  %v326 = vld [vmem:[%s322 + $0x18] sm:$0xff]
  %v327 = vld [vmem:[%s322 + $0x20] sm:$0xff]
  %s328 = scalar_lea.vmem %s4, 40
  %v329 = vld [vmem:[%s328] sm:$0xff]
  %v330 = vld [vmem:[%s328 + $0x8] sm:$0xff]
  %v331 = vld [vmem:[%s328 + $0x10] sm:$0xff]
  %v332 = vld [vmem:[%s328 + $0x18] sm:$0xff]
  %v333 = vld [vmem:[%s328 + $0x20] sm:$0xff]
  %335 = vset.pattern.permute.xlu0 0
  %336 = vperm.xlu0 %335, %v329
  %v337 = vpop.permute.xlu0 %336
  %340 = vset.pattern.permute.xlu0 0
  %341 = vperm.xlu0 %340, %v330
  %v342 = vpop.permute.xlu0 %341
  %345 = vset.pattern.permute.xlu0 0
  %346 = vperm.xlu0 %345, %v331
  %v347 = vpop.permute.xlu0 %346
  %350 = vset.pattern.permute.xlu0 0
  %351 = vperm.xlu0 %350, %v332
  %v352 = vpop.permute.xlu0 %351
  %355 = vset.pattern.permute.xlu0 0
  %356 = vperm.xlu0 %355, %v333
  %v357 = vpop.permute.xlu0 %356
  %v360 = vsel %vm211, %v323, 0
  %v363 = vsel %vm211, %v324, 0
  %v366 = vsel %vm211, %v325, 0
  %v369 = vsel %vm211, %v326, 0
  %v372 = vsel %vm211, %v327, 0
  %374 = vmatprep.subr.mxu0 0.0
  %375 = vmatpush1.msra.mxu0 %v317
  %376 = vmatprep.subr.mxu0 0.0
  %377 = vmatpush1.msra.mxu0 %v318
  %378 = vmatprep.subr.mxu0 0.0
  %379 = vmatpush1.msra.mxu0 %v319
  %380 = vmatprep.subr.mxu0 0.0
  %381 = vmatpush1.msra.mxu0 %v320
  %382 = vmatprep.subr.mxu0 0.0
  %383 = vmatpush1.msra.mxu0 %v321
  %384 = vmatprep.subr.mxu0 0.0
  %385 = vmatpush1.msra.mxu0 0.0
  %386 = vmatprep.subr.mxu0 0.0
  %387 = vmatpush1.msra.mxu0 0.0
  %388 = vmatprep.subr.mxu0 0.0
  %389 = vmatpush1.msra.mxu0 0.0
  %390 = vmatprep.subr.mxu0 0.0
  %391 = vmatpush1.msra.mxu0 0.0
  %392 = vmatprep.subr.mxu0 0.0
  %393 = vmatpush1.msra.mxu0 0.0
  %394 = vmatprep.subr.mxu0 0.0
  %395 = vmatpush1.msra.mxu0 0.0
  %396 = vmatprep.subr.mxu0 0.0
  %397 = vmatpush1.msra.mxu0 0.0
  %398 = vmatprep.subr.mxu0 0.0
  %399 = vmatpush1.msra.mxu0 0.0
  %400 = vmatprep.subr.mxu0 0.0
  %401 = vmatpush1.msra.mxu0 0.0
  %402 = vmatprep.subr.mxu0 0.0
  %403 = vmatpush1.msra.mxu0 0.0
  %404 = vmatprep.subr.mxu0 0.0
  %405 = vmatpush1.msra.mxu0 0.0
  %406 = vmatprep.subr.mxu0 0.0
  %407 = vmatpush1.msra.mxu0 0.0
  %408 = vmatprep.subr.mxu0 0.0
  %409 = vmatpush1.msra.mxu0 0.0
  %410 = vmatprep.subr.mxu0 0.0
  %411 = vmatpush1.msra.mxu0 0.0
  %412 = vmatprep.subr.mxu0 0.0
  %413 = vmatpush1.msra.mxu0 0.0
  %414 = vmatprep.subr.mxu0 0.0
  %415 = vmatpush1.msra.mxu0 0.0
  %416 = vmatprep.subr.mxu0 0.0
  %417 = vmatpush1.msra.mxu0 0.0
  %418 = vmatprep.subr.mxu0 0.0
  %419 = vmatpush1.msra.mxu0 0.0
  %420 = vmatprep.subr.mxu0 0.0
  %421 = vmatpush1.msra.mxu0 0.0
  %422 = vmatprep.subr.mxu0 0.0
  %423 = vmatpush1.msra.mxu0 0.0
  %424 = vmatprep.subr.mxu0 0.0
  %425 = vmatpush1.msra.mxu0 0.0
  %426 = vmatprep.subr.mxu0 0.0
  %427 = vmatpush1.msra.mxu0 0.0
  %428 = vmatprep.subr.mxu0 0.0
  %429 = vmatpush1.msra.mxu0 0.0
  %430 = vmatprep.subr.mxu0 0.0
  %431 = vmatpush1.msra.mxu0 0.0
  %432 = vmatprep.subr.mxu0 0.0
  %433 = vmatpush1.msra.mxu0 0.0
  %434 = vmatprep.subr.mxu0 0.0
  %435 = vmatpush1.msra.mxu0 0.0
  %436 = vmatprep.subr.mxu0 0.0
  %437 = vmatpush1.msra.mxu0 0.0
  %438 = vmatprep.mubr.f32.mxu0 0.0
  %439 = vmatmul.mubr.f32.gmra.mrb[0].mxu0 %v360
  %v440 = vpop.f32.mrb[0].mxu0
  %v441 = vadd.f32 %v337, %v440
  %v442 = vpop.f32.mrb[0].mxu0
  %443 = vmatprep.mubr.f32.mxu0 0.0
  %444 = vmatmul.mubr.f32.gmra.mrb[0].mxu0 %v363
  %v445 = vpop.f32.mrb[0].mxu0
  %v446 = vadd.f32 %v342, %v445
  %v447 = vpop.f32.mrb[0].mxu0
  %448 = vmatprep.mubr.f32.mxu0 0.0
  %449 = vmatmul.mubr.f32.gmra.mrb[0].mxu0 %v366
  %v450 = vpop.f32.mrb[0].mxu0
  %v451 = vadd.f32 %v347, %v450
  %v452 = vpop.f32.mrb[0].mxu0
  %453 = vmatprep.mubr.f32.mxu0 0.0
  %454 = vmatmul.mubr.f32.gmra.mrb[0].mxu0 %v369
  %v455 = vpop.f32.mrb[0].mxu0
  %v456 = vadd.f32 %v352, %v455
  %v457 = vpop.f32.mrb[0].mxu0
  %458 = vmatprep.mubr.f32.mxu0 0.0
  %459 = vmatmul.mubr.f32.gmra.mrb[0].mxu0 %v372
  %v460 = vpop.f32.mrb[0].mxu0
  %v461 = vadd.f32 %v357, %v460
  %v462 = vpop.f32.mrb[0].mxu0
  %463 = vdwg.mxu0
  %v464 = vtanh.pop %v441
  %v465 = vtanh.pop %v446
  %v466 = vtanh.pop %v451
  %v467 = vtanh.pop %v456
  %v468 = vtanh.pop %v461
  %s469 = scalar_lea.vmem %s3, 80
  %v470 = vld [vmem:[%s469] sm:$0xff]
  %v471 = vld [vmem:[%s469 + $0x8] sm:$0xff]
  %v472 = vld [vmem:[%s469 + $0x10] sm:$0xff]
  %v473 = vld [vmem:[%s469 + $0x18] sm:$0xff]
  %v474 = vld [vmem:[%s469 + $0x20] sm:$0xff]
  %s475 = scalar_lea.vmem %s4, 80
  %v476 = vld [vmem:[%s475] sm:$0xff]
  %v477 = vld [vmem:[%s475 + $0x8] sm:$0xff]
  %v478 = vld [vmem:[%s475 + $0x10] sm:$0xff]
  %v479 = vld [vmem:[%s475 + $0x18] sm:$0xff]
  %v480 = vld [vmem:[%s475 + $0x20] sm:$0xff]
  %482 = vset.pattern.permute.xlu0 0
  %483 = vperm.xlu0 %482, %v476
  %v484 = vpop.permute.xlu0 %483
  %487 = vset.pattern.permute.xlu0 0
  %488 = vperm.xlu0 %487, %v477
  %v489 = vpop.permute.xlu0 %488
  %492 = vset.pattern.permute.xlu0 0
  %493 = vperm.xlu0 %492, %v478
  %v494 = vpop.permute.xlu0 %493
  %497 = vset.pattern.permute.xlu0 0
  %498 = vperm.xlu0 %497, %v479
  %v499 = vpop.permute.xlu0 %498
  %502 = vset.pattern.permute.xlu0 0
  %503 = vperm.xlu0 %502, %v480
  %v504 = vpop.permute.xlu0 %503
  %v507 = vsel %vm211, %v470, 0
  %v510 = vsel %vm211, %v471, 0
  %v513 = vsel %vm211, %v472, 0
  %v516 = vsel %vm211, %v473, 0
  %v519 = vsel %vm211, %v474, 0
  %521 = vmatprep.subr.mxu0 0.0
  %522 = vmatpush1.msra.mxu0 %v464
  %523 = vmatprep.subr.mxu0 0.0
  %524 = vmatpush1.msra.mxu0 %v465
  %525 = vmatprep.subr.mxu0 0.0
  %526 = vmatpush1.msra.mxu0 %v466
  %527 = vmatprep.subr.mxu0 0.0
  %528 = vmatpush1.msra.mxu0 %v467
  %529 = vmatprep.subr.mxu0 0.0
  %530 = vmatpush1.msra.mxu0 %v468
  %531 = vmatprep.subr.mxu0 0.0
  %532 = vmatpush1.msra.mxu0 0.0
  %533 = vmatprep.subr.mxu0 0.0
  %534 = vmatpush1.msra.mxu0 0.0
  %535 = vmatprep.subr.mxu0 0.0
  %536 = vmatpush1.msra.mxu0 0.0
  %537 = vmatprep.subr.mxu0 0.0
  %538 = vmatpush1.msra.mxu0 0.0
  %539 = vmatprep.subr.mxu0 0.0
  %540 = vmatpush1.msra.mxu0 0.0
  %541 = vmatprep.subr.mxu0 0.0
  %542 = vmatpush1.msra.mxu0 0.0
  %543 = vmatprep.subr.mxu0 0.0
  %544 = vmatpush1.msra.mxu0 0.0
  %545 = vmatprep.subr.mxu0 0.0
  %546 = vmatpush1.msra.mxu0 0.0
  %547 = vmatprep.subr.mxu0 0.0
  %548 = vmatpush1.msra.mxu0 0.0
  %549 = vmatprep.subr.mxu0 0.0
  %550 = vmatpush1.msra.mxu0 0.0
  %551 = vmatprep.subr.mxu0 0.0
  %552 = vmatpush1.msra.mxu0 0.0
  %553 = vmatprep.subr.mxu0 0.0
  %554 = vmatpush1.msra.mxu0 0.0
  %555 = vmatprep.subr.mxu0 0.0
  %556 = vmatpush1.msra.mxu0 0.0
  %557 = vmatprep.subr.mxu0 0.0
  %558 = vmatpush1.msra.mxu0 0.0
  %559 = vmatprep.subr.mxu0 0.0
  %560 = vmatpush1.msra.mxu0 0.0
  %561 = vmatprep.subr.mxu0 0.0
  %562 = vmatpush1.msra.mxu0 0.0
  %563 = vmatprep.subr.mxu0 0.0
  %564 = vmatpush1.msra.mxu0 0.0
  %565 = vmatprep.subr.mxu0 0.0
  %566 = vmatpush1.msra.mxu0 0.0
  %567 = vmatprep.subr.mxu0 0.0
  %568 = vmatpush1.msra.mxu0 0.0
  %569 = vmatprep.subr.mxu0 0.0
  %570 = vmatpush1.msra.mxu0 0.0
  %571 = vmatprep.subr.mxu0 0.0
  %572 = vmatpush1.msra.mxu0 0.0
  %573 = vmatprep.subr.mxu0 0.0
  %574 = vmatpush1.msra.mxu0 0.0
  %575 = vmatprep.subr.mxu0 0.0
  %576 = vmatpush1.msra.mxu0 0.0
  %577 = vmatprep.subr.mxu0 0.0
  %578 = vmatpush1.msra.mxu0 0.0
  %579 = vmatprep.subr.mxu0 0.0
  %580 = vmatpush1.msra.mxu0 0.0
  %581 = vmatprep.subr.mxu0 0.0
  %582 = vmatpush1.msra.mxu0 0.0
  %583 = vmatprep.subr.mxu0 0.0
  %584 = vmatpush1.msra.mxu0 0.0
  %585 = vmatprep.mubr.f32.mxu0 0.0
  %586 = vmatmul.mubr.f32.gmra.mrb[0].mxu0 %v507
  %v587 = vpop.f32.mrb[0].mxu0
  %v588 = vadd.f32 %v484, %v587
  %v589 = vpop.f32.mrb[0].mxu0
  %590 = vmatprep.mubr.f32.mxu0 0.0
  %591 = vmatmul.mubr.f32.gmra.mrb[0].mxu0 %v510
  %v592 = vpop.f32.mrb[0].mxu0
  %v593 = vadd.f32 %v489, %v592
  %v594 = vpop.f32.mrb[0].mxu0
  %595 = vmatprep.mubr.f32.mxu0 0.0
  %596 = vmatmul.mubr.f32.gmra.mrb[0].mxu0 %v513
  %v597 = vpop.f32.mrb[0].mxu0
  %v598 = vadd.f32 %v494, %v597
  %v599 = vpop.f32.mrb[0].mxu0
  %600 = vmatprep.mubr.f32.mxu0 0.0
  %601 = vmatmul.mubr.f32.gmra.mrb[0].mxu0 %v516
  %v602 = vpop.f32.mrb[0].mxu0
  %v603 = vadd.f32 %v499, %v602
  %v604 = vpop.f32.mrb[0].mxu0
  %605 = vmatprep.mubr.f32.mxu0 0.0
  %606 = vmatmul.mubr.f32.gmra.mrb[0].mxu0 %v519
  %v607 = vpop.f32.mrb[0].mxu0
  %v608 = vadd.f32 %v504, %v607
  %v609 = vpop.f32.mrb[0].mxu0
  %610 = vdwg.mxu0
  %v611 = vtanh.pop %v588
  %v612 = vtanh.pop %v593
  %v613 = vtanh.pop %v598
  %v614 = vtanh.pop %v603
  %v615 = vtanh.pop %v608
  %v616 = vld [vmem:[%s5] sm:$0xff]
  %v617 = vld [vmem:[%s5 + $0x8] sm:$0xff]
  %v618 = vld [vmem:[%s5 + $0x10] sm:$0xff]
  %v619 = vld [vmem:[%s5 + $0x18] sm:$0xff]
  %v620 = vld [vmem:[%s5 + $0x20] sm:$0xff]
  %622 = vset.pattern.permute.xlu0 0
  %623 = vperm.xlu0 %622, %v616
  %v624 = vpop.permute.xlu0 %623
  %627 = vset.pattern.permute.xlu0 0
  %628 = vperm.xlu0 %627, %v617
  %v629 = vpop.permute.xlu0 %628
  %632 = vset.pattern.permute.xlu0 0
  %633 = vperm.xlu0 %632, %v618
  %v634 = vpop.permute.xlu0 %633
  %637 = vset.pattern.permute.xlu0 0
  %638 = vperm.xlu0 %637, %v619
  %v639 = vpop.permute.xlu0 %638
  %642 = vset.pattern.permute.xlu0 0
  %643 = vperm.xlu0 %642, %v620
  %v644 = vpop.permute.xlu0 %643
  %v646 = vmul.f32 %v624, %v611
  %v647 = vmul.f32 %v629, %v612
  %v648 = vmul.f32 %v634, %v613
  %v649 = vmul.f32 %v639, %v614
  %v650 = vmul.f32 %v644, %v615
  %v651 = vadd.f32 %v646, %v647
  %v652 = vadd.f32 %v651, %v648
  %v653 = vadd.f32 %v652, %v649
  %v654 = vadd.f32 %v653, %v650
  %v655 = vrot.slane %v654, 4
  %v656 = vadd.f32 %v654, %v655
  %v657 = vrot.slane %v656, 2
  %v658 = vadd.f32 %v656, %v657
  %v659 = vrot.slane %v658, 1
  %v660 = vadd.f32 %v658, %v659
  %v661 = vld [vmem:[#allocation2] sm:$0x1]
  %663 = vset.pattern.permute.xlu0 0
  %664 = vperm.xlu0 %663, %v661
  %v665 = vpop.permute.xlu0 %664
  %v667 = vlaneseq
  %v668 = vshrl.u32 %v667, 7
  %v669 = vsub.s32 0, %v668
  %v670 = vrot.slane %v665, %v669
  %v671 = vadd.f32 %v660, %v670
  %672 = vst [vmem:[%s7] sm:$0x1] %v671
  // Predicated region
  $region30: #{dnn_forward.1} parent=0 // pred_check
    _
  $region31: #{dnn_forward.1} parent=0 // pred_check_branch
    %674 = sbr.rel (0) target = $region33
  $region32: #{dnn_forward.1} parent=0 // pred_region
    _
  $region33: #{dnn_forward.1} parent=0 // pred_fallthru
    _
  // Predicated region
  $region34: #{dnn_forward.1} parent=0 // pred_check
    _
  $region35: #{dnn_forward.1} parent=0 // pred_check_branch
    %676 = sbr.rel (0) target = $region37
  $region36: #{dnn_forward.1} parent=0 // pred_region
    _
  $region37: #{dnn_forward.1} parent=0 // pred_fallthru
    _

</llo_original>
